<compile_context>
chip_gen: v7x
topology: tpu7x:2x2x1
jax: 0.10.0
libtpu: 0.0.40
codegen_flags: <defaults>
</compile_context>

<pallas_src>
import jax
import jax.numpy as jnp
from jax.experimental import pallas as pl
from jax.experimental.pallas import tpu as pltpu

BN_EPS = 1e-5


def _round_up(a, b):
    return (a + b - 1) // b * b


def _cdiv(a, b):
    return (a + b - 1) // b


def _single_buffered_spec(block_shape, index_map):
    """Grid-invariant input: a second pipeline buffer is pure VMEM waste."""
    try:
        return pl.BlockSpec(block_shape, index_map, pipeline_mode=pl.Buffered(1))
    except Exception:  # older Pallas without pipeline_mode support
        return pl.BlockSpec(block_shape, index_map)


# ---------------------------------------------------------------------------
# Kernel 1: streamed segment-mean pooling (global_mean_pool over residues).
# grid = (d_chunks, n_tiles): outer axis splits the feature dim ("parallel" ->
# both v7x TensorCores stream HBM concurrently); inner axis streams residue
# tiles ("arbitrary" reduction).  The pooled output block is resident across
# the reduction axis and doubles as the f32 accumulator (no extra scratch).
# ---------------------------------------------------------------------------
def _segment_mean_kernel(x_ref, batch_ref, valid_ref, invc_ref, pooled_ref):
    n_step = pl.program_id(1)

    @pl.when(n_step == 0)
    def _init():
        pooled_ref[...] = jnp.zeros_like(pooled_ref)

    batch = batch_ref[...]                                    # (1, TN)  i32
    x = x_ref[...]                                            # (TN, Dc) bf16
    # Rows past N (partial last block) carry unspecified data; select them to
    # zero so they cannot contribute (a multiply would still propagate NaN).
    x = jnp.where(valid_ref[...] != 0.0, x, jnp.zeros_like(x))

    g_pad = pooled_ref.shape[0]
    tn = batch.shape[1]
    seg = jax.lax.broadcasted_iota(jnp.int32, (g_pad, tn), 0)
    mask = (seg == batch).astype(x.dtype)                     # (G_pad, TN) bf16 one-hot
    # TODO(synk): for batches with hundreds of graphs, scalar-prefetch the
    # per-tile [first_graph, last_graph] span and build the mask only over the
    # spanned graphs (write via pl.ds) to keep the kernel HBM-bound.
    pooled_ref[...] += jnp.dot(mask, x, preferred_element_type=jnp.float32)

    @pl.when(n_step == pl.num_programs(1) - 1)
    def _finish():
        pooled_ref[...] = pooled_ref[...] * invc_ref[...]     # segment mean


# ---------------------------------------------------------------------------
# Kernel 2: tiny MLP head (BN pre-folded into Linear1).  Un-pipelined single
# invocation; whole (padded) arrays live in VMEM.
# ---------------------------------------------------------------------------
def _mlp_head_kernel(pooled_ref, w1_ref, b1_ref, w2_ref, b2_ref, logits_ref):
    pooled = pooled_ref[...].astype(jnp.bfloat16)
    h = jnp.dot(pooled, w1_ref[...], preferred_element_type=jnp.float32) + b1_ref[...]
    h = jnp.maximum(h, 0.0).astype(jnp.bfloat16)
    logits_ref[...] = (jnp.dot(h, w2_ref[...], preferred_element_type=jnp.float32)
                       + b2_ref[...])


def gvp_classification_forward(residue_feat, batch_idx, num_graphs, params,
                               *, target_block_bytes=4 * 1024 * 1024):
    """Returns (class_logits [G, C], graph_feature_embedding [G, D])."""
    N, D = residue_feat.shape
    H = params["w1"].shape[1]
    C = params["w2"].shape[1]
    G = num_graphs

    # Lane/sublane-aligned padded shapes.
    G_pad = _round_up(max(G, 1), 8)
    D_pad = _round_up(D, 128)
    H_pad = _round_up(H, 128)
    C_pad = _round_up(C, 128)

    # Feature-dim split: 2 column chunks when the lane-block count allows it,
    # so the "parallel" axis can occupy both v7x TensorCores (roughly neutral
    # on single-TC v5e/v6e since tiles are sized by bytes, not rows).
    lane_blocks = D_pad // 128
    d_chunks = 2 if (lane_blocks >= 2 and lane_blocks % 2 == 0) else 1
    d_chunk = D_pad // d_chunks

    # Residue tile sized by bytes (~4 MiB bf16 per block), clamped to the data.
    TN = _round_up(max(target_block_bytes // (d_chunk * 2), 1), 128)
    TN = min(TN, _round_up(N, 128))
    n_tiles = _cdiv(N, TN)
    NT = n_tiles * TN

    # ---- host-side prep -----------------------------------------------------
    if residue_feat.dtype == jnp.bfloat16 and D == D_pad:
        x_p = residue_feat                                   # zero-copy path
    else:
        x_p = jnp.zeros((N, D_pad), jnp.bfloat16).at[:, :D].set(
            residue_feat.astype(jnp.bfloat16))               # pad feature dim only

    batch_ids = batch_idx.astype(jnp.int32)
    batch_p = jnp.full((1, NT), -1, jnp.int32).at[0, :N].set(batch_ids)
    valid_p = jnp.zeros((NT, 1), jnp.float32).at[:N, :].set(1.0)

    counts = jnp.bincount(batch_ids, length=G_pad).astype(jnp.float32)
    invc = (1.0 / jnp.maximum(counts, 1.0)).reshape(G_pad, 1)   # empty-graph safe

    # Fold eval-mode BatchNorm1d into Linear1; store weights in bf16.
    scale = params["bn_gamma"] * jax.lax.rsqrt(params["bn_var"] + BN_EPS)   # (1, H)
    w1_f = params["w1"] * scale
    b1_f = (params["b1"] - params["bn_mean"]) * scale + params["bn_beta"]

    w1_p = jnp.zeros((D_pad, H_pad), jnp.bfloat16).at[:D, :H].set(
        w1_f.astype(jnp.bfloat16))
    b1_p = jnp.zeros((1, H_pad), jnp.float32).at[:, :H].set(b1_f)
    w2_p = jnp.zeros((H_pad, C_pad), jnp.bfloat16).at[:H, :C].set(
        params["w2"].astype(jnp.bfloat16))
    b2_p = jnp.zeros((1, C_pad), jnp.float32).at[:, :C].set(params["b2"])

    # VMEM budget: ~75% of physical (v5e/v6e -> 96 MiB, v7x -> 48 MiB).
    try:
        vmem_cap = int(pltpu.get_tpu_info().vmem_capacity_bytes)
    except Exception:
        vmem_cap = 64 * 1024 * 1024
    vmem_limit = int(min(96 * 1024 * 1024, max(32 * 1024 * 1024, vmem_cap * 3 // 4)))

    # ---- kernel 1: streamed segment-mean pooling ----------------------------
    grid_spec = pltpu.PrefetchScalarGridSpec(
        num_scalar_prefetch=0,
        grid=(d_chunks, n_tiles),
        in_specs=[
            pl.BlockSpec((TN, d_chunk), lambda d, n: (n, d)),        # x (bf16)
            pl.BlockSpec((1, TN), lambda d, n: (0, n)),              # graph ids
            pl.BlockSpec((TN, 1), lambda d, n: (n, 0)),              # row validity
            _single_buffered_spec((G_pad, 1), lambda d, n: (0, 0)),  # 1/counts
        ],
        out_specs=pl.BlockSpec((G_pad, d_chunk), lambda d, n: (0, d)),
    )

    pool_cost = pl.CostEstimate(
        flops=int(2 * G_pad * NT * D_pad),
        transcendentals=0,
        bytes_accessed=int(N * D_pad * 2                     # x (bf16, once total)
                           + d_chunks * NT * (4 + 4)         # ids + validity
                           + G_pad * 4                       # 1/counts
                           + G_pad * D_pad * 4),             # pooled writeback
    )

    pooled_p = pl.pallas_call(
        _segment_mean_kernel,
        grid_spec=grid_spec,
        out_shape=jax.ShapeDtypeStruct((G_pad, D_pad), jnp.float32),
        compiler_params=pltpu.CompilerParams(
            dimension_semantics=("parallel", "arbitrary"),
            vmem_limit_bytes=vmem_limit,
        ),
        cost_estimate=pool_cost,
    )(x_p, batch_p, valid_p, invc)

    # ---- kernel 2: tiny MLP head --------------------------------------------
    logits_p = pl.pallas_call(
        _mlp_head_kernel,
        out_shape=jax.ShapeDtypeStruct((G_pad, C_pad), jnp.float32),
        compiler_params=pltpu.CompilerParams(vmem_limit_bytes=vmem_limit),
    )(pooled_p, w1_p, b1_p, w2_p, b2_p)

    return logits_p[:G, :C], pooled_p[:G, :D]


def make_params(key, D, H, C):
    """Deterministic synthetic parameters for the classification MLP head
    (Linear(D,H) -> BatchNorm1d(H) -> ReLU -> Linear(H,C))."""
    k1, k2, k3, k4 = jax.random.split(key, 4)
    return {
        "w1": jax.random.normal(k1, (D, H), jnp.float32) * 0.05,
        "b1": jax.random.normal(k2, (1, H), jnp.float32) * 0.01,
        # PyTorch BatchNorm1d default init: weight=1, bias=0, mean=0, var=1
        "bn_gamma": jnp.ones((1, H), jnp.float32),
        "bn_beta": jnp.zeros((1, H), jnp.float32),
        "bn_mean": jnp.zeros((1, H), jnp.float32),
        "bn_var": jnp.ones((1, H), jnp.float32),
        "w2": jax.random.normal(k3, (H, C), jnp.float32) * 0.05,
        "b2": jax.random.normal(k4, (1, C), jnp.float32) * 0.01,
    }


def reference_forward(residue_feat, batch_idx, num_graphs, params):
    """Pure-JAX reference mirroring the PyTorch forward (eval-mode BN)."""
    G = num_graphs
    one_hot = (batch_idx[None, :] == jnp.arange(G)[:, None]).astype(jnp.float32)
    counts = jnp.maximum(one_hot.sum(axis=1, keepdims=True), 1.0)
    pooled = one_hot @ residue_feat / counts
    h = pooled @ params["w1"] + params["b1"]
    h = (h - params["bn_mean"]) / jnp.sqrt(params["bn_var"] + BN_EPS)
    h = h * params["bn_gamma"] + params["bn_beta"]
    h = jnp.maximum(h, 0.0)
    logits = h @ params["w2"] + params["b2"]
    return logits, pooled


if __name__ == "__main__":
    # Small, self-consistent shapes: N=16 residues, G=2 graphs,
    # D=32 node feature dim, H=64 hidden, C=8 classes.
    N, G, D, H, C = 16, 2, 32, 64, 8

    key = jax.random.PRNGKey(0)
    k_feat, k_params = jax.random.split(key)

    residue_feature_embedding = jax.random.normal(k_feat, (N, D), jnp.float32)
    batch_idx = jnp.concatenate(
        [jnp.zeros((7,), jnp.int32), jnp.ones((9,), jnp.int32)]
    )
    params = make_params(k_params, D, H, C)

    class_logits, graph_feature_embedding = gvp_classification_forward(
        residue_feature_embedding, batch_idx, G, params
    )
    class_logits = jax.block_until_ready(class_logits)
    graph_feature_embedding = jax.block_until_ready(graph_feature_embedding)

    # Reference on the same bf16-quantized features / weights the kernel uses.
    x_q = residue_feature_embedding.astype(jnp.bfloat16).astype(jnp.float32)
    params_q = dict(params)
    params_q["w1"] = params["w1"].astype(jnp.bfloat16).astype(jnp.float32)
    params_q["w2"] = params["w2"].astype(jnp.bfloat16).astype(jnp.float32)
    ref_logits, ref_pooled = reference_forward(x_q, batch_idx, G, params_q)

    assert class_logits.shape == (G, C)
    assert graph_feature_embedding.shape == (G, D)
    assert jnp.allclose(graph_feature_embedding, ref_pooled, atol=2e-3, rtol=2e-3)
    assert jnp.allclose(class_logits, ref_logits, atol=1e-2, rtol=1e-2)

    print("KERNEL_OK")
</pallas_src>

<mosaic_0001>
module attributes {stable_mosaic.version = 11 : i64} {
  func.func @_segment_mean_kernel(%arg0: i32, %arg1: i32, %arg2: memref<128x128xbf16, #tpu.memory_space<vmem>>, %arg3: memref<1x128xi32, #tpu.memory_space<vmem>>, %arg4: memref<128x1xf32, #tpu.memory_space<vmem>>, %arg5: memref<8x1xf32, #tpu.memory_space<vmem>>, %arg6: memref<8x128xf32, #tpu.memory_space<vmem>>) attributes {dimension_semantics = [#tpu.dimension_semantics<parallel>, #tpu.dimension_semantics<arbitrary>], iteration_bounds = array<i64: 1, 1>, scalar_prefetch = 0 : i64, scratch_operands = 0 : i64, tpu.core_type = #tpu.core_type<tc>, window_params = [{transform_indices = @transform_0, window_bounds = array<i64: 128, 128>}, {transform_indices = @transform_1, window_bounds = array<i64: 1, 128>}, {transform_indices = @transform_2, window_bounds = array<i64: 128, 1>}, {pipeline_mode = #tpu.pipeline_mode<synchronous>, transform_indices = @transform_3, window_bounds = array<i64: 8, 1>}, {transform_indices = @transform_4, window_bounds = array<i64: 8, 128>}]} {
    %c0_i32 = arith.constant 0 : i32
    %0 = arith.cmpi eq, %arg1, %c0_i32 : i32
    %1 = arith.extui %0 : i1 to i32
    %c0_i32_0 = arith.constant 0 : i32
    %2 = arith.cmpi ne, %1, %c0_i32_0 : i32
    scf.if %2 {
      %cst_14 = arith.constant 0.000000e+00 : f32
      %25 = vector.broadcast %cst_14 : f32 to vector<8x128xf32>
      %c0_15 = arith.constant 0 : index
      %c0_16 = arith.constant 0 : index
      %26 = vector.load %arg6[%c0_15, %c0_16] : memref<8x128xf32, #tpu.memory_space<vmem>>, vector<8x128xf32>
      tpu.vector_store %arg6[%c0_15, %c0_16], %25 {strides = array<i32>} : memref<8x128xf32, #tpu.memory_space<vmem>>, vector<8x128xf32>,
    } else {
    }
    %c0 = arith.constant 0 : index
    %c0_1 = arith.constant 0 : index
    %3 = vector.load %arg3[%c0, %c0_1] : memref<1x128xi32, #tpu.memory_space<vmem>>, vector<1x128xi32>
    %c0_2 = arith.constant 0 : index
    %c0_3 = arith.constant 0 : index
    %4 = vector.load %arg2[%c0_2, %c0_3] : memref<128x128xbf16, #tpu.memory_space<vmem>>, vector<128x128xbf16>
    %c0_4 = arith.constant 0 : index
    %c0_5 = arith.constant 0 : index
    %5 = vector.load %arg4[%c0_4, %c0_5] : memref<128x1xf32, #tpu.memory_space<vmem>>, vector<128x1xf32>
    %cst = arith.constant 0.000000e+00 : f32
    %6 = vector.broadcast %cst : f32 to vector<128x1xf32>
    %7 = arith.cmpf one, %5, %6 : vector<128x1xf32>
    %cst_6 = arith.constant 0.000000e+00 : bf16
    %8 = vector.broadcast %cst_6 : bf16 to vector<128x128xbf16>
    %9 = vector.shape_cast %7 : vector<128x1xi1> to vector<128x1xi1>
    %10 = vector.broadcast %9 : vector<128x1xi1> to vector<128x128xi1>
    %11 = arith.select %10, %4, %8 : vector<128x128xi1>, vector<128x128xbf16>
    %12 = tpu.iota {dimensions = array<i32: 0>} : vector<8x128xi32>
    %13 = vector.broadcast %3 : vector<1x128xi32> to vector<8x128xi32>
    %14 = arith.cmpi eq, %12, %13 : vector<8x128xi32>
    %15 = arith.extui %14 : vector<8x128xi1> to vector<8x128xi32>
    %16 = arith.sitofp %15 : vector<8x128xi32> to vector<8x128xf32>
    %17 = arith.truncf %16 : vector<8x128xf32> to vector<8x128xbf16>
    %c0_7 = arith.constant 0 : index
    %c0_8 = arith.constant 0 : index
    %18 = vector.load %arg6[%c0_7, %c0_8] : memref<8x128xf32, #tpu.memory_space<vmem>>, vector<8x128xf32>
    %cst_9 = arith.constant dense<0.000000e+00> : vector<8x128xf32>
    %19 = tpu.matmul %17, %11, %cst_9 {dimension_numbers = #tpu.dot_dimension_numbers<[1], [0], [0], [1], [0, 0, 1, 1], [], []>} : vector<8x128xbf16>, vector<128x128xbf16>, vector<8x128xf32> -> vector<8x128xf32>
    %20 = arith.addf %18, %19 : vector<8x128xf32>
    %c0_10 = arith.constant 0 : index
    %c0_11 = arith.constant 0 : index
    %21 = vector.load %arg6[%c0_10, %c0_11] : memref<8x128xf32, #tpu.memory_space<vmem>>, vector<8x128xf32>
    tpu.vector_store %arg6[%c0_10, %c0_11], %20 {strides = array<i32>} : memref<8x128xf32, #tpu.memory_space<vmem>>, vector<8x128xf32>,
    %c0_i32_12 = arith.constant 0 : i32
    %22 = arith.cmpi eq, %arg1, %c0_i32_12 : i32
    %23 = arith.extui %22 : i1 to i32
    %c0_i32_13 = arith.constant 0 : i32
    %24 = arith.cmpi ne, %23, %c0_i32_13 : i32
    scf.if %24 {
      %c0_14 = arith.constant 0 : index
      %c0_15 = arith.constant 0 : index
      %25 = vector.load %arg6[%c0_14, %c0_15] : memref<8x128xf32, #tpu.memory_space<vmem>>, vector<8x128xf32>
      %c0_16 = arith.constant 0 : index
      %c0_17 = arith.constant 0 : index
      %26 = vector.load %arg5[%c0_16, %c0_17] : memref<8x1xf32, #tpu.memory_space<vmem>>, vector<8x1xf32>
      %27 = vector.broadcast %26 : vector<8x1xf32> to vector<8x128xf32>
      %28 = arith.mulf %25, %27 : vector<8x128xf32>
      %c0_18 = arith.constant 0 : index
      %c0_19 = arith.constant 0 : index
      %29 = vector.load %arg6[%c0_18, %c0_19] : memref<8x128xf32, #tpu.memory_space<vmem>>, vector<8x128xf32>
      tpu.vector_store %arg6[%c0_18, %c0_19], %28 {strides = array<i32>} : memref<8x128xf32, #tpu.memory_space<vmem>>, vector<8x128xf32>,
    } else {
    }
    return
  }
  func.func @transform_0(%arg0: i32, %arg1: i32) -> (i32, i32) {
    %c0_i32 = arith.constant 0 : i32
    return %arg1, %arg0 : i32, i32
  }
  func.func @transform_1(%arg0: i32, %arg1: i32) -> (i32, i32) {
    %c0_i32 = arith.constant 0 : i32
    %c0_i32_0 = arith.constant 0 : i32
    return %c0_i32, %arg1 : i32, i32
  }
  func.func @transform_2(%arg0: i32, %arg1: i32) -> (i32, i32) {
    %c0_i32 = arith.constant 0 : i32
    %c0_i32_0 = arith.constant 0 : i32
    return %arg1, %c0_i32 : i32, i32
  }
  func.func @transform_3(%arg0: i32, %arg1: i32) -> (i32, i32) {
    %c0_i32 = arith.constant 0 : i32
    %c0_i32_0 = arith.constant 0 : i32
    %c0_i32_1 = arith.constant 0 : i32
    return %c0_i32, %c0_i32_0 : i32, i32
  }
  func.func @transform_4(%arg0: i32, %arg1: i32) -> (i32, i32) {
    %c0_i32 = arith.constant 0 : i32
    %c0_i32_0 = arith.constant 0 : i32
    return %c0_i32, %arg0 : i32, i32
  }
}

</mosaic_0001>

<llo_original>
// kernel: tpu_custom_call.1
$region0: #{tpu_custom_call.1}
  #allocation0 [shape = 'u32[]', space=smem, size = 0x4, offset = 0x4, fixed_abs, tag = 'smem constant byte address 0x4 - core index']
  #allocation1 [shape = 'u32[144,128]{1,0:T(1,128)}', space=vmem, size = 0x12000, scoped, tag = 'internal scratch']
  %s0 = inlined_call_operand.vmem [shape: bf16[16,128], index: 0, kind: input, shape index: {}]
  %s1 = inlined_call_operand.vmem [shape: s32[1,128], index: 1, kind: input, shape index: {}]
  %s2 = inlined_call_operand.vmem [shape: f32[128,1], index: 2, kind: input, shape index: {}]
  %s3 = inlined_call_operand.vmem [shape: f32[8,1], index: 3, kind: input, shape index: {}]
  %s4 = inlined_call_operand.hbm [shape: f32[8,128], index: 4, kind: output, shape index: {}]
  %s5 = sld [smem:[#allocation0]]
  $region34: #{tpu_custom_call.1} parent=0
    _
  %s7 = ssub.s32 1, %s5
  %s8 = scalar_select 0, %s7, %s5
  $region1: #{tpu_custom_call.1} parent=0
    #allocation2 [shape = 'u8[4096]{0}', space=vmem, size = 0x1000, scoped, tag = 'output window, operand 0, single buffered']
    #allocation3 [shape = 's32[1]{0}', space=sflag, size = 0x4, scoped, tag = 'scoped memory for tpu_custom_call.1']
    %9 = vsyncpa [#allocation3], 0
    // Predicated region
    $region2: #{tpu_custom_call.1} parent=1 // pred_check
      _
    $region3: #{tpu_custom_call.1} parent=1 // pred_check_branch
      %11 = sbr.rel (0) target = $region5
    $region4: #{tpu_custom_call.1} parent=1 // pred_region
      _
    $region5: #{tpu_custom_call.1} parent=1 // pred_fallthru
      _
    // Predicated region
    $region6: #{tpu_custom_call.1} parent=1 // pred_check
      _
    $region7: #{tpu_custom_call.1} parent=1 // pred_check_branch
      %13 = sbr.rel (0) target = $region9
    $region8: #{tpu_custom_call.1} parent=1 // pred_region
      _
    $region9: #{tpu_custom_call.1} parent=1 // pred_fallthru
      _
    // Predicated region
    $region10: #{tpu_custom_call.1} parent=1 // pred_check
      _
    $region11: #{tpu_custom_call.1} parent=1 // pred_check_branch
      %15 = sbr.rel (0) target = $region13
    $region12: #{tpu_custom_call.1} parent=1 // pred_region
      _
    $region13: #{tpu_custom_call.1} parent=1 // pred_fallthru
      _
    // Predicated region
    $region14: #{tpu_custom_call.1} parent=1 // pred_check
      _
    $region15: #{tpu_custom_call.1} parent=1 // pred_check_branch
      %17 = sbr.rel (0) target = $region17
    $region16: #{tpu_custom_call.1} parent=1 // pred_region
      _
    $region17: #{tpu_custom_call.1} parent=1 // pred_fallthru
      _
    %p19 = scmp.eq.s32.totalorder 0, 0
    // Predicated region
    $region18: #{tpu_custom_call.1} parent=1 // pred_check
      %p20 = pneg %p19
    $region19: #{tpu_custom_call.1} parent=1 // pred_check_branch
      %22 = sbr.rel (%p20) target = $region21
    $region20: #{tpu_custom_call.1} parent=1 // pred_region
      %23 = vst [vmem:[#allocation2] sm:$0xff] 0.0
    $region21: #{tpu_custom_call.1} parent=1 // pred_fallthru
      _
    %v24 = vld [vmem:[%s1] sm:$0x1]
    %v25 = vld [vmem:[%s0] sm:$0xf]
    %v26 = vld [vmem:[%s0 + $0x4] sm:$0xf]
    %v27 = vld [vmem:[%s0 + $0x8] sm:$0xf]
    %v28 = vld [vmem:[%s0 + $0xc] sm:$0xf]
    %v29 = vld [vmem:[%s0 + $0x10] sm:$0xf]
    %v30 = vld [vmem:[%s0 + $0x14] sm:$0xf]
    %v31 = vld [vmem:[%s0 + $0x18] sm:$0xf]
    %v32 = vld [vmem:[%s0 + $0x1c] sm:$0xf]
    %v33 = vld [vmem:[%s0 + $0x20] sm:$0xf]
    %v34 = vld [vmem:[%s0 + $0x24] sm:$0xf]
    %v35 = vld [vmem:[%s0 + $0x28] sm:$0xf]
    %v36 = vld [vmem:[%s0 + $0x2c] sm:$0xf]
    %v37 = vld [vmem:[%s0 + $0x30] sm:$0xf]
    %v38 = vld [vmem:[%s0 + $0x34] sm:$0xf]
    %v39 = vld [vmem:[%s0 + $0x38] sm:$0xf]
    %v40 = vld [vmem:[%s0 + $0x3c] sm:$0xf]
    %v41 = vld [vmem:[%s2] sm:$0xff]
    %v42 = vld [vmem:[%s2 + $0x8] sm:$0xff]
    %v43 = vld [vmem:[%s2 + $0x10] sm:$0xff]
    %v44 = vld [vmem:[%s2 + $0x18] sm:$0xff]
    %v45 = vld [vmem:[%s2 + $0x20] sm:$0xff]
    %v46 = vld [vmem:[%s2 + $0x28] sm:$0xff]
    %v47 = vld [vmem:[%s2 + $0x30] sm:$0xff]
    %v48 = vld [vmem:[%s2 + $0x38] sm:$0xff]
    %v49 = vld [vmem:[%s2 + $0x40] sm:$0xff]
    %v50 = vld [vmem:[%s2 + $0x48] sm:$0xff]
    %v51 = vld [vmem:[%s2 + $0x50] sm:$0xff]
    %v52 = vld [vmem:[%s2 + $0x58] sm:$0xff]
    %v53 = vld [vmem:[%s2 + $0x60] sm:$0xff]
    %v54 = vld [vmem:[%s2 + $0x68] sm:$0xff]
    %v55 = vld [vmem:[%s2 + $0x70] sm:$0xff]
    %v56 = vld [vmem:[%s2 + $0x78] sm:$0xff]
    %vm57 = vcmp.ne.f32.partialorder %v41, 0.0
    %vm58 = vcmp.ne.f32.partialorder %v42, 0.0
    %vm59 = vcmp.ne.f32.partialorder %v43, 0.0
    %vm60 = vcmp.ne.f32.partialorder %v44, 0.0
    %vm61 = vcmp.ne.f32.partialorder %v45, 0.0
    %vm62 = vcmp.ne.f32.partialorder %v46, 0.0
    %vm63 = vcmp.ne.f32.partialorder %v47, 0.0
    %vm64 = vcmp.ne.f32.partialorder %v48, 0.0
    %vm65 = vcmp.ne.f32.partialorder %v49, 0.0
    %vm66 = vcmp.ne.f32.partialorder %v50, 0.0
    %vm67 = vcmp.ne.f32.partialorder %v51, 0.0
    %vm68 = vcmp.ne.f32.partialorder %v52, 0.0
    %vm69 = vcmp.ne.f32.partialorder %v53, 0.0
    %vm70 = vcmp.ne.f32.partialorder %v54, 0.0
    %vm71 = vcmp.ne.f32.partialorder %v55, 0.0
    %vm72 = vcmp.ne.f32.partialorder %v56, 0.0
    %v73 = vsel %vm57, 1, 0
    %v74 = vsel %vm58, 1, 0
    %v75 = vsel %vm59, 1, 0
    %v76 = vsel %vm60, 1, 0
    %v77 = vsel %vm61, 1, 0
    %v78 = vsel %vm62, 1, 0
    %v79 = vsel %vm63, 1, 0
    %v80 = vsel %vm64, 1, 0
    %v81 = vsel %vm65, 1, 0
    %v82 = vsel %vm66, 1, 0
    %v83 = vsel %vm67, 1, 0
    %v84 = vsel %vm68, 1, 0
    %v85 = vsel %vm69, 1, 0
    %v86 = vsel %vm70, 1, 0
    %v87 = vsel %vm71, 1, 0
    %v88 = vsel %vm72, 1, 0
    %89 = vset.pattern.permute.xlu0 0
    %90 = vperm.xlu0 %89, %v73
    %v91 = vpop.permute.xlu0 %90
    %92 = vset.pattern.permute.xlu0 0
    %93 = vperm.xlu0 %92, %v74
    %v94 = vpop.permute.xlu0 %93
    %95 = vset.pattern.permute.xlu0 0
    %96 = vperm.xlu0 %95, %v75
    %v97 = vpop.permute.xlu0 %96
    %98 = vset.pattern.permute.xlu0 0
    %99 = vperm.xlu0 %98, %v76
    %v100 = vpop.permute.xlu0 %99
    %101 = vset.pattern.permute.xlu0 0
    %102 = vperm.xlu0 %101, %v77
    %v103 = vpop.permute.xlu0 %102
    %104 = vset.pattern.permute.xlu0 0
    %105 = vperm.xlu0 %104, %v78
    %v106 = vpop.permute.xlu0 %105
    %107 = vset.pattern.permute.xlu0 0
    %108 = vperm.xlu0 %107, %v79
    %v109 = vpop.permute.xlu0 %108
    %110 = vset.pattern.permute.xlu0 0
    %111 = vperm.xlu0 %110, %v80
    %v112 = vpop.permute.xlu0 %111
    %113 = vset.pattern.permute.xlu0 0
    %114 = vperm.xlu0 %113, %v81
    %v115 = vpop.permute.xlu0 %114
    %116 = vset.pattern.permute.xlu0 0
    %117 = vperm.xlu0 %116, %v82
    %v118 = vpop.permute.xlu0 %117
    %119 = vset.pattern.permute.xlu0 0
    %120 = vperm.xlu0 %119, %v83
    %v121 = vpop.permute.xlu0 %120
    %122 = vset.pattern.permute.xlu0 0
    %123 = vperm.xlu0 %122, %v84
    %v124 = vpop.permute.xlu0 %123
    %125 = vset.pattern.permute.xlu0 0
    %126 = vperm.xlu0 %125, %v85
    %v127 = vpop.permute.xlu0 %126
    %128 = vset.pattern.permute.xlu0 0
    %129 = vperm.xlu0 %128, %v86
    %v130 = vpop.permute.xlu0 %129
    %131 = vset.pattern.permute.xlu0 0
    %132 = vperm.xlu0 %131, %v87
    %v133 = vpop.permute.xlu0 %132
    %134 = vset.pattern.permute.xlu0 0
    %135 = vperm.xlu0 %134, %v88
    %v136 = vpop.permute.xlu0 %135
    %vm137 = vcmp.eq.s32.totalorder %v91, 1
    %vm138 = vcmp.eq.s32.totalorder %v94, 1
    %vm139 = vcmp.eq.s32.totalorder %v97, 1
    %vm140 = vcmp.eq.s32.totalorder %v100, 1
    %vm141 = vcmp.eq.s32.totalorder %v103, 1
    %vm142 = vcmp.eq.s32.totalorder %v106, 1
    %vm143 = vcmp.eq.s32.totalorder %v109, 1
    %vm144 = vcmp.eq.s32.totalorder %v112, 1
    %vm145 = vcmp.eq.s32.totalorder %v115, 1
    %vm146 = vcmp.eq.s32.totalorder %v118, 1
    %vm147 = vcmp.eq.s32.totalorder %v121, 1
    %vm148 = vcmp.eq.s32.totalorder %v124, 1
    %vm149 = vcmp.eq.s32.totalorder %v127, 1
    %vm150 = vcmp.eq.s32.totalorder %v130, 1
    %vm151 = vcmp.eq.s32.totalorder %v133, 1
    %vm152 = vcmp.eq.s32.totalorder %v136, 1
    %vm153 = vmpackc.low %vm137, %vm137
    %vm154 = vmpackc.low %vm138, %vm138
    %vm155 = vmpackc.low %vm139, %vm139
    %vm156 = vmpackc.low %vm140, %vm140
    %vm157 = vmpackc.low %vm141, %vm141
    %vm158 = vmpackc.low %vm142, %vm142
    %vm159 = vmpackc.low %vm143, %vm143
    %vm160 = vmpackc.low %vm144, %vm144
    %vm161 = vmpackc.low %vm145, %vm145
    %vm162 = vmpackc.low %vm146, %vm146
    %vm163 = vmpackc.low %vm147, %vm147
    %vm164 = vmpackc.low %vm148, %vm148
    %vm165 = vmpackc.low %vm149, %vm149
    %vm166 = vmpackc.low %vm150, %vm150
    %vm167 = vmpackc.low %vm151, %vm151
    %vm168 = vmpackc.low %vm152, %vm152
    %v169 = vsel %vm153, %v25, 0
    %v170 = vsel %vm154, %v26, 0
    %v171 = vsel %vm155, %v27, 0
    %v172 = vsel %vm156, %v28, 0
    %v173 = vsel %vm157, %v29, 0
    %v174 = vsel %vm158, %v30, 0
    %v175 = vsel %vm159, %v31, 0
    %v176 = vsel %vm160, %v32, 0
    %v177 = vsel %vm161, %v33, 0
    %v178 = vsel %vm162, %v34, 0
    %v179 = vsel %vm163, %v35, 0
    %v180 = vsel %vm164, %v36, 0
    %v181 = vsel %vm165, %v37, 0
    %v182 = vsel %vm166, %v38, 0
    %v183 = vsel %vm167, %v39, 0
    %v184 = vsel %vm168, %v40, 0
    %v185 = vlaneseq
    %v186 = vshrl.u32 %v185, 7
    %v187 = vlaneseq
    %v188 = vshrl.u32 %v187, 7
    %v189 = vsub.s32 0, %v188
    %v190 = vrot.slane %v24, %v189
    %vm191 = vcmp.eq.s32.totalorder %v186, %v190
    %v192 = vsel %vm191, 1, 0
    %v193 = vcvt.s32.f32 %v192
    %v194 = vpack.c.bf16 %v193, %v193
    %v195 = vld [vmem:[#allocation2] sm:$0xff]
    %v212 = vunpack.c.l.b16 %v169
    %v213 = vunpack.c.l.b16 %v170
    %v214 = vunpack.c.l.b16 %v171
    %v215 = vunpack.c.l.b16 %v172
    %v216 = vunpack.c.l.b16 %v173
    %v217 = vunpack.c.l.b16 %v174
    %v218 = vunpack.c.l.b16 %v175
    %v219 = vunpack.c.l.b16 %v176
    %v220 = vunpack.c.l.b16 %v177
    %v221 = vunpack.c.l.b16 %v178
    %v222 = vunpack.c.l.b16 %v179
    %v223 = vunpack.c.l.b16 %v180
    %v224 = vunpack.c.l.b16 %v181
    %v225 = vunpack.c.l.b16 %v182
    %v226 = vunpack.c.l.b16 %v183
    %v227 = vunpack.c.l.b16 %v184
    %v228 = vpack.c.b16 %v213, %v212
    %v229 = vpack.c.b16 %v215, %v214
    %v230 = vpack.c.b16 %v217, %v216
    %v231 = vpack.c.b16 %v219, %v218
    %v232 = vpack.c.b16 %v221, %v220
    %v233 = vpack.c.b16 %v223, %v222
    %v234 = vpack.c.b16 %v225, %v224
    %v235 = vpack.c.b16 %v227, %v226
    %244 = vmatprep.subr.bf16.mxu0 0
    %245 = vmatpush1.bf16.msra.mxu0 %v228
    %246 = vmatprep.subr.bf16.mxu0 0
    %247 = vmatpush1.bf16.msra.mxu0 %v229
    %248 = vmatprep.subr.bf16.mxu0 0
    %249 = vmatpush1.bf16.msra.mxu0 %v230
    %250 = vmatprep.subr.bf16.mxu0 0
    %251 = vmatpush1.bf16.msra.mxu0 %v231
    %252 = vmatprep.subr.bf16.mxu0 0
    %253 = vmatpush1.bf16.msra.mxu0 %v232
    %254 = vmatprep.subr.bf16.mxu0 0
    %255 = vmatpush1.bf16.msra.mxu0 %v233
    %256 = vmatprep.subr.bf16.mxu0 0
    %257 = vmatpush1.bf16.msra.mxu0 %v234
    %258 = vmatprep.subr.bf16.mxu0 0
    %259 = vmatpush1.bf16.msra.mxu0 %v235
    %260 = vmatprep.subr.bf16.mxu0 0
    %261 = vmatpush1.bf16.msra.mxu0 0
    %262 = vmatprep.subr.bf16.mxu0 0
    %263 = vmatpush1.bf16.msra.mxu0 0
    %264 = vmatprep.subr.bf16.mxu0 0
    %265 = vmatpush1.bf16.msra.mxu0 0
    %266 = vmatprep.subr.bf16.mxu0 0
    %267 = vmatpush1.bf16.msra.mxu0 0
    %268 = vmatprep.subr.bf16.mxu0 0
    %269 = vmatpush1.bf16.msra.mxu0 0
    %270 = vmatprep.subr.bf16.mxu0 0
    %271 = vmatpush1.bf16.msra.mxu0 0
    %272 = vmatprep.subr.bf16.mxu0 0
    %273 = vmatpush1.bf16.msra.mxu0 0
    %274 = vmatprep.subr.bf16.mxu0 0
    %275 = vmatpush1.bf16.msra.mxu0 0
    %276 = vmatprep.mubr.bf16.mxu0 0
    %277 = vmatmul.mubr.bf16.gmra.mrb[0].mxu0 %v194
    %v278 = vpop.f32.mrb[0].mxu0
    %v279 = vadd.f32 0.0, %v278
    %v280 = vpop.f32.mrb[0].mxu0
    %v281 = vpop.f32.mrb[0].mxu0
    %v282 = vpop.f32.mrb[0].mxu0
    %283 = vdwg.mxu0
    %v284 = vadd.f32 %v195, %v279
    %285 = vst [vmem:[#allocation2] sm:$0xff] %v284
    // Predicated region
    $region22: #{tpu_custom_call.1} parent=1 // pred_check
      %p286 = pneg %p19
    $region23: #{tpu_custom_call.1} parent=1 // pred_check_branch
      %288 = sbr.rel (%p286) target = $region25
    $region24: #{tpu_custom_call.1} parent=1 // pred_region
      %v289 = vld [vmem:[#allocation2] sm:$0xff]
      %v290 = vld [vmem:[%s3] sm:$0xff]
      %292 = vset.pattern.permute.xlu0 0
      %293 = vperm.xlu0 %292, %v290
      %v294 = vpop.permute.xlu0 %293
      %v296 = vmul.f32 %v289, %v294
      %297 = vst [vmem:[#allocation2] sm:$0xff] %v296
    $region25: #{tpu_custom_call.1} parent=1 // pred_fallthru
      _
    // Predicated region
    $region26: #{tpu_custom_call.1} parent=1 // pred_check
      _
    $region27: #{tpu_custom_call.1} parent=1 // pred_check_branch
      %299 = sbr.rel (0) target = $region29
    $region28: #{tpu_custom_call.1} parent=1 // pred_region
      %s301 = ssub.s32 128, 128
      %302 = vsyncadd [#allocation3], %s301
      %s304 = sshll.u32 [#allocation2], 4
      %s305 = int_to_ptr.vmem [resolvable:$true] %s304
      %307 = dma.vmem_to_hbm [thread:$0]  %s305, 128, %s4, [#allocation3]
    $region29: #{tpu_custom_call.1} parent=1 // pred_fallthru
      _
    // Predicated region
    $region30: #{tpu_custom_call.1} parent=1 // pred_check
      _
    $region31: #{tpu_custom_call.1} parent=1 // pred_check_branch
      %309 = sbr.rel (0) target = $region33
    $region32: #{tpu_custom_call.1} parent=1 // pred_region
      %310 = dma.done [#allocation3], 128
    $region33: #{tpu_custom_call.1} parent=1 // pred_fallthru
      _
    %311 = vsyncpa [#allocation3], 1

</llo_original>
